<compile_context>
chip_gen: v6e
topology: v6e:2x2x1
jax: 0.10.0
libtpu: 0.0.40
codegen_flags: <defaults>
</compile_context>

<pallas_src>
import jax
import jax.numpy as jnp
from jax.experimental import pallas as pl
from jax.experimental.pallas import tpu as pltpu

LANE = 128
SUBLANE = 8
NEG_BIG = -1e30  # padded logit bias -> exp() underflows to exactly 0 (safe in f32)


def _round_up(x, m):
    return ((x + m - 1) // m) * m


def init_params(key, input_dims, fc1_dims, fc2_dims, n_actions):
    """Deterministic init mimicking nn.Linear default U(-1/sqrt(fan_in), +)."""
    ks = jax.random.split(key, 6)

    def lin(kw, kb, fan_in, fan_out):
        bound = 1.0 / jnp.sqrt(jnp.float32(fan_in))
        w = jax.random.uniform(kw, (fan_in, fan_out), jnp.float32, -bound, bound)
        b = jax.random.uniform(kb, (fan_out,), jnp.float32, -bound, bound)
        return w, b

    w1, b1 = lin(ks[0], ks[1], input_dims, fc1_dims)
    w2, b2 = lin(ks[2], ks[3], fc1_dims, fc2_dims)
    w3, b3 = lin(ks[4], ks[5], fc2_dims, n_actions)
    return {"w1": w1, "b1": b1, "w2": w2, "b2": b2, "w3": w3, "b3": b3}


def pack_actor_params(params):
    """Pack all weights + biases into one f32 (rows, slab_width) slab.

    Row layout (all offsets 8-aligned; lane widths are multiples of 128):
      [r_w1 : r_w1+input_dims, 0:hidden_w]  W1  (cols >= fc1 are 0)
      [r_w2 : r_w2+hidden_w  , 0:hidden_w]  W2  (rows >= fc1, cols >= fc2 are 0)
      [r_w3 : r_w3+hidden_w  , 0:out_w   ]  W3  (rows >= fc2, cols >= n_actions are 0)
      [r_b1] b1 (padded lanes 0)   [r_b2] b2 (padded lanes 0)
      [r_b3] b3 (padded lanes NEG_BIG so softmax over the full lane width is exact)
    """
    w1, b1 = params["w1"], params["b1"]
    w2, b2 = params["w2"], params["b2"]
    w3, b3 = params["w3"], params["b3"]
    input_dims, fc1 = w1.shape
    _, fc2 = w2.shape
    _, n_actions = w3.shape

    hidden_w = _round_up(max(fc1, fc2), LANE)
    out_w = _round_up(n_actions, LANE)
    width = max(hidden_w, out_w)

    r_w1 = 0
    r_w2 = r_w1 + _round_up(input_dims, SUBLANE)
    r_w3 = r_w2 + hidden_w
    r_b1 = r_w3 + hidden_w
    r_b2 = r_b1 + SUBLANE
    r_b3 = r_b2 + SUBLANE
    rows = r_b3 + SUBLANE

    slab = jnp.zeros((rows, width), jnp.float32)
    slab = slab.at[r_w1:r_w1 + input_dims, :fc1].set(w1)
    slab = slab.at[r_w2:r_w2 + fc1, :fc2].set(w2)
    slab = slab.at[r_w3:r_w3 + fc2, :n_actions].set(w3)
    slab = slab.at[r_b1, :fc1].set(b1)                 # padded lanes stay 0 -> ReLU kills them
    slab = slab.at[r_b2, :fc2].set(b2)
    slab = slab.at[r_b3, :out_w].set(NEG_BIG)          # padded logits -> exp == 0
    slab = slab.at[r_b3, :n_actions].set(b3)

    return {
        "slab": slab,
        "dims": (input_dims, fc1, fc2, n_actions),
        "offsets": (r_w1, r_w2, r_w3, r_b1, r_b2, r_b3),
        "hidden_w": hidden_w,
        "out_w": out_w,
    }


def _make_kernel(input_dims, hidden_w, out_w, offsets):
    r_w1, r_w2, r_w3, r_b1, r_b2, r_b3 = offsets

    def kernel(x_ref, p_ref, o_ref):
        x = x_ref[...]                                              # (tm, in) f32

        # fc1 + ReLU  (full 128-lane weight/bias slices; padded cols are 0)
        w1 = p_ref[r_w1:r_w1 + input_dims, 0:hidden_w]
        b1 = p_ref[r_b1:r_b1 + 1, 0:hidden_w]
        h1 = jnp.maximum(jnp.dot(x, w1, preferred_element_type=jnp.float32) + b1, 0.0)

        # fc2 + ReLU  (h1 stays lane-dense; padded W2 rows/cols are 0)
        w2 = p_ref[r_w2:r_w2 + hidden_w, 0:hidden_w]
        b2 = p_ref[r_b2:r_b2 + 1, 0:hidden_w]
        h2 = jnp.maximum(jnp.dot(h1, w2, preferred_element_type=jnp.float32) + b2, 0.0)

        # fc3 at out_w (= round_up(n_actions, 128)) lane width only
        w3 = p_ref[r_w3:r_w3 + hidden_w, 0:out_w]
        b3 = p_ref[r_b3:r_b3 + 1, 0:out_w]
        logits = jnp.dot(h2, w3, preferred_element_type=jnp.float32) + b3

        # numerically stable softmax; padded lanes have logit -1e30 -> exp == 0.
        # Exact f32 divide so every row sums to 1 (approx reciprocal was too loose).
        m = jnp.max(logits, axis=-1, keepdims=True)
        e = jnp.exp(logits - m)
        denom = jnp.sum(e, axis=-1, keepdims=True)
        o_ref[...] = (e / denom).astype(o_ref.dtype)

    return kernel


def actor_forward(obs, packed, *, tile_m=None, max_tile_m=1024):
    """obs: (B, input_dims) float32; packed: output of pack_actor_params."""
    slab = packed["slab"]
    input_dims, fc1, fc2, n_actions = packed["dims"]
    hidden_w, out_w = packed["hidden_w"], packed["out_w"]

    B = obs.shape[0]
    assert obs.shape[1] == input_dims

    B8 = _round_up(B, SUBLANE)
    if tile_m is None:
        # Small/medium batch: one grid step (no per-step overhead, no pad waste).
        # Large batch: cap the tile so the "parallel" axis has >=2 tiles (v7x's
        # two TensorCores), still tiny vs. VMEM (obs+out ~ 0.55 KB/row).
        tile_m = B8 if B8 <= max_tile_m else max_tile_m
    tile_m = _round_up(min(tile_m, B8), SUBLANE)
    B_pad = _round_up(B8, tile_m)
    if B_pad != B:
        obs = jnp.pad(obs, ((0, B_pad - B), (0, 0)))

    kernel = _make_kernel(input_dims, hidden_w, out_w, packed["offsets"])

    out = pl.pallas_call(
        kernel,
        out_shape=jax.ShapeDtypeStruct((B_pad, out_w), jnp.float32),
        grid=(B_pad // tile_m,),
        in_specs=[
            # batch-tiled observations (last dim == full array dim)
            pl.BlockSpec((tile_m, input_dims), lambda i: (i, 0)),
            # whole parameter slab, resident in VMEM for all grid steps
            pl.BlockSpec(memory_space=pltpu.MemorySpace.VMEM),
        ],
        # lane-dense output (out_w is a multiple of 128) -> unmasked stores
        out_specs=pl.BlockSpec((tile_m, out_w), lambda i: (i, 0)),
        compiler_params=pltpu.CompilerParams(
            dimension_semantics=("parallel",),   # shard batch tiles across TCs
        ),
    )(obs, slab)

    return out[:B, :n_actions]


if __name__ == "__main__":
    key = jax.random.PRNGKey(0)
    k_obs, k_params = jax.random.split(key)

    # MB-MPO evaluates many particles/tasks at once -> stack into one batch.
    batch = 200            # round_up(200, 8) = 200 -> tile_m = 200, grid = (1,)
    input_dims = 8
    fc1_dims = 32
    fc2_dims = 32
    n_actions = 4

    obs = jax.random.normal(k_obs, (batch, input_dims), dtype=jnp.float32)
    params = init_params(k_params, input_dims, fc1_dims, fc2_dims, n_actions)
    packed = pack_actor_params(params)            # single f32 (288, 128) slab

    probs = actor_forward(obs, packed)
    jax.block_until_ready(probs)

    # pure-JAX f32 reference (HIGHEST precision dots = true f32 accumulation)
    def ref_forward(x, p):
        hp = jax.lax.Precision.HIGHEST
        h = jnp.maximum(jnp.dot(x, p["w1"], precision=hp) + p["b1"], 0.0)
        h = jnp.maximum(jnp.dot(h, p["w2"], precision=hp) + p["b2"], 0.0)
        logits = jnp.dot(h, p["w3"], precision=hp) + p["b3"]
        return jax.nn.softmax(logits, axis=-1)

    ref = ref_forward(obs, params)

    assert probs.shape == (batch, n_actions)
    row_sums = jnp.sum(probs, axis=-1)
    assert bool(jnp.all(jnp.abs(row_sums - 1.0) < 1e-3)), "softmax rows must sum to 1"
    assert bool(jnp.max(jnp.abs(probs - ref)) < 5e-3), "mismatch vs. JAX reference"

    print("KERNEL_OK")
</pallas_src>

<mosaic_0001>
module attributes {stable_mosaic.version = 11 : i64} {
  func.func @kernel(%arg0: i32, %arg1: memref<200x8xf32, #tpu.memory_space<vmem>>, %arg2: memref<288x128xf32, #tpu.memory_space<vmem>>, %arg3: memref<200x128xf32, #tpu.memory_space<vmem>>) attributes {dimension_semantics = [#tpu.dimension_semantics<parallel>], iteration_bounds = array<i64: 1>, scalar_prefetch = 0 : i64, scratch_operands = 0 : i64, tpu.core_type = #tpu.core_type<tc>, window_params = [{transform_indices = @transform_0, window_bounds = array<i64: 200, 8>}, {pipeline_mode = #tpu.pipeline_mode<synchronous>, transform_indices = @transform_1, window_bounds = array<i64: 288, 128>}, {transform_indices = @transform_2, window_bounds = array<i64: 200, 128>}]} {
    %c0 = arith.constant 0 : index
    %c0_0 = arith.constant 0 : index
    %0 = vector.load %arg1[%c0, %c0_0] : memref<200x8xf32, #tpu.memory_space<vmem>>, vector<200x8xf32>
    %c0_1 = arith.constant 0 : index
    %c0_2 = arith.constant 0 : index
    %1 = vector.load %arg2[%c0_1, %c0_2] : memref<288x128xf32, #tpu.memory_space<vmem>>, vector<8x128xf32>
    %c264 = arith.constant 264 : index
    %c0_3 = arith.constant 0 : index
    %2 = vector.load %arg2[%c264, %c0_3] : memref<288x128xf32, #tpu.memory_space<vmem>>, vector<1x128xf32>
    %cst = arith.constant dense<0.000000e+00> : vector<200x128xf32>
    %3 = tpu.matmul %0, %1, %cst {dimension_numbers = #tpu.dot_dimension_numbers<[1], [0], [0], [1], [0, 0, 1, 1], [], []>} : vector<200x8xf32>, vector<8x128xf32>, vector<200x128xf32> -> vector<200x128xf32>
    %4 = vector.broadcast %2 : vector<1x128xf32> to vector<200x128xf32>
    %5 = arith.addf %3, %4 : vector<200x128xf32>
    %cst_4 = arith.constant 0.000000e+00 : f32
    %6 = vector.broadcast %cst_4 : f32 to vector<200x128xf32>
    %7 = arith.maximumf %5, %6 : vector<200x128xf32>
    %c8 = arith.constant 8 : index
    %c0_5 = arith.constant 0 : index
    %8 = vector.load %arg2[%c8, %c0_5] : memref<288x128xf32, #tpu.memory_space<vmem>>, vector<128x128xf32>
    %c272 = arith.constant 272 : index
    %c0_6 = arith.constant 0 : index
    %9 = vector.load %arg2[%c272, %c0_6] : memref<288x128xf32, #tpu.memory_space<vmem>>, vector<1x128xf32>
    %cst_7 = arith.constant dense<0.000000e+00> : vector<200x128xf32>
    %10 = tpu.matmul %7, %8, %cst_7 {dimension_numbers = #tpu.dot_dimension_numbers<[1], [0], [0], [1], [0, 0, 1, 1], [], []>} : vector<200x128xf32>, vector<128x128xf32>, vector<200x128xf32> -> vector<200x128xf32>
    %11 = vector.broadcast %9 : vector<1x128xf32> to vector<200x128xf32>
    %12 = arith.addf %10, %11 : vector<200x128xf32>
    %cst_8 = arith.constant 0.000000e+00 : f32
    %13 = vector.broadcast %cst_8 : f32 to vector<200x128xf32>
    %14 = arith.maximumf %12, %13 : vector<200x128xf32>
    %c136 = arith.constant 136 : index
    %c0_9 = arith.constant 0 : index
    %15 = vector.load %arg2[%c136, %c0_9] : memref<288x128xf32, #tpu.memory_space<vmem>>, vector<128x128xf32>
    %c280 = arith.constant 280 : index
    %c0_10 = arith.constant 0 : index
    %16 = vector.load %arg2[%c280, %c0_10] : memref<288x128xf32, #tpu.memory_space<vmem>>, vector<1x128xf32>
    %cst_11 = arith.constant dense<0.000000e+00> : vector<200x128xf32>
    %17 = tpu.matmul %14, %15, %cst_11 {dimension_numbers = #tpu.dot_dimension_numbers<[1], [0], [0], [1], [0, 0, 1, 1], [], []>} : vector<200x128xf32>, vector<128x128xf32>, vector<200x128xf32> -> vector<200x128xf32>
    %18 = vector.broadcast %16 : vector<1x128xf32> to vector<200x128xf32>
    %19 = arith.addf %17, %18 : vector<200x128xf32>
    %cst_12 = arith.constant dense<0xFF800000> : vector<200xf32>
    %20 = vector.multi_reduction <maximumf>, %19, %cst_12 [1] : vector<200x128xf32> to vector<200xf32>
    %21 = vector.shape_cast %20 : vector<200xf32> to vector<200x1xf32>
    %22 = vector.broadcast %21 : vector<200x1xf32> to vector<200x128xf32>
    %23 = arith.subf %19, %22 : vector<200x128xf32>
    %24 = math.exp %23 : vector<200x128xf32>
    %cst_13 = arith.constant dense<0.000000e+00> : vector<200xf32>
    %25 = vector.multi_reduction <add>, %24, %cst_13 [1] : vector<200x128xf32> to vector<200xf32>
    %26 = vector.shape_cast %25 : vector<200xf32> to vector<200x1xf32>
    %27 = vector.broadcast %26 : vector<200x1xf32> to vector<200x128xf32>
    %28 = arith.divf %24, %27 : vector<200x128xf32>
    %c0_14 = arith.constant 0 : index
    %c0_15 = arith.constant 0 : index
    %29 = vector.load %arg3[%c0_14, %c0_15] : memref<200x128xf32, #tpu.memory_space<vmem>>, vector<200x128xf32>
    tpu.vector_store %arg3[%c0_14, %c0_15], %28 {strides = array<i32>} : memref<200x128xf32, #tpu.memory_space<vmem>>, vector<200x128xf32>,
    return
  }
  func.func @transform_0(%arg0: i32) -> (i32, i32) {
    %c0_i32 = arith.constant 0 : i32
    %c0_i32_0 = arith.constant 0 : i32
    return %arg0, %c0_i32 : i32, i32
  }
  func.func @transform_1(%arg0: i32) -> (i32, i32) {
    %c0_i32 = arith.constant 0 : i32
    %c0_i32_0 = arith.constant 0 : i32
    %c0_i32_1 = arith.constant 0 : i32
    return %c0_i32, %c0_i32_0 : i32, i32
  }
  func.func @transform_2(%arg0: i32) -> (i32, i32) {
    %c0_i32 = arith.constant 0 : i32
    %c0_i32_0 = arith.constant 0 : i32
    return %arg0, %c0_i32 : i32, i32
  }
}

</mosaic_0001>

<llo_original>
// kernel: tpu_custom_call.1
$region0: #{tpu_custom_call.1}
  #allocation0 [shape = 'u32[]', space=smem, size = 0x4, offset = 0x4, fixed_abs, tag = 'smem constant byte address 0x4 - core index']
  #allocation1 [shape = 'u32[144,128]{1,0:T(1,128)}', space=vmem, size = 0x12000, scoped, tag = 'internal scratch']
  %s0 = inlined_call_operand.vmem [shape: f32[200,8], index: 0, kind: input, shape index: {}]
  %s1 = inlined_call_operand.hbm [shape: f32[288,128], index: 1, kind: input, shape index: {}]
  %s2 = inlined_call_operand.hbm [shape: f32[200,128], index: 2, kind: output, shape index: {}]
  %s3 = sld [smem:[#allocation0]]
  $region22: #{tpu_custom_call.1} parent=0
    _
  %s5 = ssub.s32 1, %s3
  %s6 = scalar_select 0, %s5, %s3
  $region1: #{tpu_custom_call.1} parent=0
    #allocation2 [shape = 'u8[147456]{0}', space=vmem, size = 0x24000, scoped, tag = 'input window, operand 1, single buffered']
    #allocation3 [shape = 's32[1]{0}', space=sflag, size = 0x4, scoped, tag = 'scoped memory for tpu_custom_call.1']
    #allocation4 [shape = 's32[1]{0}', space=sflag, size = 0x4, scoped, tag = 'scoped memory for tpu_custom_call.1']
    #allocation5 [shape = 'u8[102400]{0}', space=vmem, size = 0x19000, scoped, tag = 'output window, operand 0, single buffered']
    %7 = vsyncpa [#allocation3], 0
    %8 = vsyncpa [#allocation4], 0
    // Predicated region
    $region2: #{tpu_custom_call.1} parent=1 // pred_check
      _
    $region3: #{tpu_custom_call.1} parent=1 // pred_check_branch
      %10 = sbr.rel (0) target = $region5
    $region4: #{tpu_custom_call.1} parent=1 // pred_region
      _
    $region5: #{tpu_custom_call.1} parent=1 // pred_fallthru
      _
    // Predicated region
    $region6: #{tpu_custom_call.1} parent=1 // pred_check
      _
    $region7: #{tpu_custom_call.1} parent=1 // pred_check_branch
      %12 = sbr.rel (0) target = $region9
    $region8: #{tpu_custom_call.1} parent=1 // pred_region
      %s14 = ssub.s32 4608, 4608
      %15 = vsyncadd [#allocation3], %s14
      %s16 = sshll.u32 [#allocation2], 4
      %s17 = int_to_ptr.vmem [resolvable:$true] %s16
      %22 = dma.hbm_to_vmem [thread:$0]  %s1, 4608, %s17, [#allocation3], 128, 128, 8
    $region9: #{tpu_custom_call.1} parent=1 // pred_fallthru
      _
    // Predicated region
    $region10: #{tpu_custom_call.1} parent=1 // pred_check
      _
    $region11: #{tpu_custom_call.1} parent=1 // pred_check_branch
      %24 = sbr.rel (0) target = $region13
    $region12: #{tpu_custom_call.1} parent=1 // pred_region
      %25 = dma.done [#allocation3], 4608
    $region13: #{tpu_custom_call.1} parent=1 // pred_fallthru
      _
    %v26 = vld [vmem:[%s0] sm:$0xff]
    %v27 = vld [vmem:[%s0 + $0x8] sm:$0xff]
    %v28 = vld [vmem:[%s0 + $0x10] sm:$0xff]
    %v29 = vld [vmem:[%s0 + $0x18] sm:$0xff]
    %v30 = vld [vmem:[%s0 + $0x20] sm:$0xff]
    %v31 = vld [vmem:[%s0 + $0x28] sm:$0xff]
    %v32 = vld [vmem:[%s0 + $0x30] sm:$0xff]
    %v33 = vld [vmem:[%s0 + $0x38] sm:$0xff]
    %v34 = vld [vmem:[%s0 + $0x40] sm:$0xff]
    %v35 = vld [vmem:[%s0 + $0x48] sm:$0xff]
    %v36 = vld [vmem:[%s0 + $0x50] sm:$0xff]
    %v37 = vld [vmem:[%s0 + $0x58] sm:$0xff]
    %v38 = vld [vmem:[%s0 + $0x60] sm:$0xff]
    %v39 = vld [vmem:[%s0 + $0x68] sm:$0xff]
    %v40 = vld [vmem:[%s0 + $0x70] sm:$0xff]
    %v41 = vld [vmem:[%s0 + $0x78] sm:$0xff]
    %v42 = vld [vmem:[%s0 + $0x80] sm:$0xff]
    %v43 = vld [vmem:[%s0 + $0x88] sm:$0xff]
    %v44 = vld [vmem:[%s0 + $0x90] sm:$0xff]
    %v45 = vld [vmem:[%s0 + $0x98] sm:$0xff]
    %v46 = vld [vmem:[%s0 + $0xa0] sm:$0xff]
    %v47 = vld [vmem:[%s0 + $0xa8] sm:$0xff]
    %v48 = vld [vmem:[%s0 + $0xb0] sm:$0xff]
    %v49 = vld [vmem:[%s0 + $0xb8] sm:$0xff]
    %v50 = vld [vmem:[%s0 + $0xc0] sm:$0xff]
    %v51 = vld [vmem:[#allocation2] sm:$0xff]
    %v52 = vld [vmem:[#allocation2 + $0x108] sm:$0x1]
    %v53 = vlaneseq
    %v54 = vshrl.u32 %v53, 7
    %v55 = vsub.s32 0, %v54
    %v56 = vrot.slane %v52, %v55
    %vm57 = vcmask 64512
    %v59 = vsel %vm57, %v26, 0
    %v62 = vsel %vm57, %v27, 0
    %v65 = vsel %vm57, %v28, 0
    %v68 = vsel %vm57, %v29, 0
    %v71 = vsel %vm57, %v30, 0
    %v74 = vsel %vm57, %v31, 0
    %v77 = vsel %vm57, %v32, 0
    %v80 = vsel %vm57, %v33, 0
    %v83 = vsel %vm57, %v34, 0
    %v86 = vsel %vm57, %v35, 0
    %v89 = vsel %vm57, %v36, 0
    %v92 = vsel %vm57, %v37, 0
    %v95 = vsel %vm57, %v38, 0
    %v98 = vsel %vm57, %v39, 0
    %v101 = vsel %vm57, %v40, 0
    %v104 = vsel %vm57, %v41, 0
    %v107 = vsel %vm57, %v42, 0
    %v110 = vsel %vm57, %v43, 0
    %v113 = vsel %vm57, %v44, 0
    %v116 = vsel %vm57, %v45, 0
    %v119 = vsel %vm57, %v46, 0
    %v122 = vsel %vm57, %v47, 0
    %v125 = vsel %vm57, %v48, 0
    %v128 = vsel %vm57, %v49, 0
    %v131 = vsel %vm57, %v50, 0
    %133 = vmatprep.subr.mxu0 0.0
    %134 = vmatpush1.msra.mxu0 0.0
    %135 = vmatprep.subr.mxu0 0.0
    %136 = vmatpush1.msra.mxu0 0.0
    %137 = vmatprep.subr.mxu0 0.0
    %138 = vmatpush1.msra.mxu0 0.0
    %139 = vmatprep.subr.mxu0 0.0
    %140 = vmatpush1.msra.mxu0 0.0
    %141 = vmatprep.subr.mxu0 0.0
    %142 = vmatpush1.msra.mxu0 0.0
    %143 = vmatprep.subr.mxu0 0.0
    %144 = vmatpush1.msra.mxu0 0.0
    %145 = vmatprep.subr.mxu0 0.0
    %146 = vmatpush1.msra.mxu0 0.0
    %147 = vmatprep.subr.mxu0 0.0
    %148 = vmatpush1.msra.mxu0 0.0
    %149 = vmatprep.subr.mxu0 0.0
    %150 = vmatpush1.msra.mxu0 0.0
    %151 = vmatprep.subr.mxu0 0.0
    %152 = vmatpush1.msra.mxu0 0.0
    %153 = vmatprep.subr.mxu0 0.0
    %154 = vmatpush1.msra.mxu0 0.0
    %155 = vmatprep.subr.mxu0 0.0
    %156 = vmatpush1.msra.mxu0 0.0
    %157 = vmatprep.subr.mxu0 0.0
    %158 = vmatpush1.msra.mxu0 0.0
    %159 = vmatprep.subr.mxu0 0.0
    %160 = vmatpush1.msra.mxu0 0.0
    %161 = vmatprep.subr.mxu0 0.0
    %162 = vmatpush1.msra.mxu0 0.0
    %163 = vmatprep.subr.mxu0 0.0
    %164 = vmatpush1.msra.mxu0 %v51
    %165 = vmatprep.subr.mxu0 0.0
    %166 = vmatpush2.msra.mxu0 0.0
    %167 = vmatprep.subr.mxu0 0.0
    %168 = vmatpush2.msra.mxu0 0.0
    %169 = vmatprep.subr.mxu0 0.0
    %170 = vmatpush2.msra.mxu0 0.0
    %171 = vmatprep.subr.mxu0 0.0
    %172 = vmatpush2.msra.mxu0 0.0
    %173 = vmatprep.subr.mxu0 0.0
    %174 = vmatpush2.msra.mxu0 0.0
    %175 = vmatprep.subr.mxu0 0.0
    %176 = vmatpush2.msra.mxu0 0.0
    %177 = vmatprep.subr.mxu0 0.0
    %178 = vmatpush2.msra.mxu0 0.0
    %179 = vmatprep.subr.mxu0 0.0
    %180 = vmatpush2.msra.mxu0 0.0
    %181 = vmatprep.subr.mxu0 0.0
    %182 = vmatpush2.msra.mxu0 0.0
    %183 = vmatprep.subr.mxu0 0.0
    %184 = vmatpush2.msra.mxu0 0.0
    %185 = vmatprep.subr.mxu0 0.0
    %186 = vmatpush2.msra.mxu0 0.0
    %187 = vmatprep.subr.mxu0 0.0
    %188 = vmatpush2.msra.mxu0 0.0
    %189 = vmatprep.subr.mxu0 0.0
    %190 = vmatpush2.msra.mxu0 0.0
    %191 = vmatprep.subr.mxu0 0.0
    %192 = vmatpush2.msra.mxu0 0.0
    %193 = vmatprep.subr.mxu0 0.0
    %194 = vmatpush2.msra.mxu0 0.0
    %195 = vmatprep.subr.mxu0 0.0
    %196 = vmatpush2.msra.mxu0 0.0
    %197 = vmatprep.mubr.f32.mxu0 0.0
    %198 = vmatmul.mubr.f32.gmra.mxu0 %v59
    %v199 = vpop.f32.mrf.mxu0
    %v200 = vadd.f32 %v56, %v199
    %v201 = vpop.f32.mrf.mxu0
    %202 = vmatprep.mubr.f32.mxu0 0.0
    %203 = vmatmul.mubr.f32.gmra.mxu0 %v62
    %v204 = vpop.f32.mrf.mxu0
    %v205 = vadd.f32 %v56, %v204
    %v206 = vpop.f32.mrf.mxu0
    %207 = vmatprep.mubr.f32.mxu0 0.0
    %208 = vmatmul.mubr.f32.gmra.mxu0 %v65
    %v209 = vpop.f32.mrf.mxu0
    %v210 = vadd.f32 %v56, %v209
    %v211 = vpop.f32.mrf.mxu0
    %212 = vmatprep.mubr.f32.mxu0 0.0
    %213 = vmatmul.mubr.f32.gmra.mxu0 %v68
    %v214 = vpop.f32.mrf.mxu0
    %v215 = vadd.f32 %v56, %v214
    %v216 = vpop.f32.mrf.mxu0
    %217 = vmatprep.mubr.f32.mxu0 0.0
    %218 = vmatmul.mubr.f32.gmra.mxu0 %v71
    %v219 = vpop.f32.mrf.mxu0
    %v220 = vadd.f32 %v56, %v219
    %v221 = vpop.f32.mrf.mxu0
    %222 = vmatprep.mubr.f32.mxu0 0.0
    %223 = vmatmul.mubr.f32.gmra.mxu0 %v74
    %v224 = vpop.f32.mrf.mxu0
    %v225 = vadd.f32 %v56, %v224
    %v226 = vpop.f32.mrf.mxu0
    %227 = vmatprep.mubr.f32.mxu0 0.0
    %228 = vmatmul.mubr.f32.gmra.mxu0 %v77
    %v229 = vpop.f32.mrf.mxu0
    %v230 = vadd.f32 %v56, %v229
    %v231 = vpop.f32.mrf.mxu0
    %232 = vmatprep.mubr.f32.mxu0 0.0
    %233 = vmatmul.mubr.f32.gmra.mxu0 %v80
    %v234 = vpop.f32.mrf.mxu0
    %v235 = vadd.f32 %v56, %v234
    %v236 = vpop.f32.mrf.mxu0
    %237 = vmatprep.mubr.f32.mxu0 0.0
    %238 = vmatmul.mubr.f32.gmra.mxu0 %v83
    %v239 = vpop.f32.mrf.mxu0
    %v240 = vadd.f32 %v56, %v239
    %v241 = vpop.f32.mrf.mxu0
    %242 = vmatprep.mubr.f32.mxu0 0.0
    %243 = vmatmul.mubr.f32.gmra.mxu0 %v86
    %v244 = vpop.f32.mrf.mxu0
    %v245 = vadd.f32 %v56, %v244
    %v246 = vpop.f32.mrf.mxu0
    %247 = vmatprep.mubr.f32.mxu0 0.0
    %248 = vmatmul.mubr.f32.gmra.mxu0 %v89
    %v249 = vpop.f32.mrf.mxu0
    %v250 = vadd.f32 %v56, %v249
    %v251 = vpop.f32.mrf.mxu0
    %252 = vmatprep.mubr.f32.mxu0 0.0
    %253 = vmatmul.mubr.f32.gmra.mxu0 %v92
    %v254 = vpop.f32.mrf.mxu0
    %v255 = vadd.f32 %v56, %v254
    %v256 = vpop.f32.mrf.mxu0
    %257 = vmatprep.mubr.f32.mxu0 0.0
    %258 = vmatmul.mubr.f32.gmra.mxu0 %v95
    %v259 = vpop.f32.mrf.mxu0
    %v260 = vadd.f32 %v56, %v259
    %v261 = vpop.f32.mrf.mxu0
    %262 = vmatprep.mubr.f32.mxu0 0.0
    %263 = vmatmul.mubr.f32.gmra.mxu0 %v98
    %v264 = vpop.f32.mrf.mxu0
    %v265 = vadd.f32 %v56, %v264
    %v266 = vpop.f32.mrf.mxu0
    %267 = vmatprep.mubr.f32.mxu0 0.0
    %268 = vmatmul.mubr.f32.gmra.mxu0 %v101
    %v269 = vpop.f32.mrf.mxu0
    %v270 = vadd.f32 %v56, %v269
    %v271 = vpop.f32.mrf.mxu0
    %272 = vmatprep.mubr.f32.mxu0 0.0
    %273 = vmatmul.mubr.f32.gmra.mxu0 %v104
    %v274 = vpop.f32.mrf.mxu0
    %v275 = vadd.f32 %v56, %v274
    %v276 = vpop.f32.mrf.mxu0
    %277 = vmatprep.mubr.f32.mxu0 0.0
    %278 = vmatmul.mubr.f32.gmra.mxu0 %v107
    %v279 = vpop.f32.mrf.mxu0
    %v280 = vadd.f32 %v56, %v279
    %v281 = vpop.f32.mrf.mxu0
    %282 = vmatprep.mubr.f32.mxu0 0.0
    %283 = vmatmul.mubr.f32.gmra.mxu0 %v110
    %v284 = vpop.f32.mrf.mxu0
    %v285 = vadd.f32 %v56, %v284
    %v286 = vpop.f32.mrf.mxu0
    %287 = vmatprep.mubr.f32.mxu0 0.0
    %288 = vmatmul.mubr.f32.gmra.mxu0 %v113
    %v289 = vpop.f32.mrf.mxu0
    %v290 = vadd.f32 %v56, %v289
    %v291 = vpop.f32.mrf.mxu0
    %292 = vmatprep.mubr.f32.mxu0 0.0
    %293 = vmatmul.mubr.f32.gmra.mxu0 %v116
    %v294 = vpop.f32.mrf.mxu0
    %v295 = vadd.f32 %v56, %v294
    %v296 = vpop.f32.mrf.mxu0
    %297 = vmatprep.mubr.f32.mxu0 0.0
    %298 = vmatmul.mubr.f32.gmra.mxu0 %v119
    %v299 = vpop.f32.mrf.mxu0
    %v300 = vadd.f32 %v56, %v299
    %v301 = vpop.f32.mrf.mxu0
    %302 = vmatprep.mubr.f32.mxu0 0.0
    %303 = vmatmul.mubr.f32.gmra.mxu0 %v122
    %v304 = vpop.f32.mrf.mxu0
    %v305 = vadd.f32 %v56, %v304
    %v306 = vpop.f32.mrf.mxu0
    %307 = vmatprep.mubr.f32.mxu0 0.0
    %308 = vmatmul.mubr.f32.gmra.mxu0 %v125
    %v309 = vpop.f32.mrf.mxu0
    %v310 = vadd.f32 %v56, %v309
    %v311 = vpop.f32.mrf.mxu0
    %312 = vmatprep.mubr.f32.mxu0 0.0
    %313 = vmatmul.mubr.f32.gmra.mxu0 %v128
    %v314 = vpop.f32.mrf.mxu0
    %v315 = vadd.f32 %v56, %v314
    %v316 = vpop.f32.mrf.mxu0
    %317 = vmatprep.mubr.f32.mxu0 0.0
    %318 = vmatmul.mubr.f32.gmra.mxu0 %v131
    %v319 = vpop.f32.mrf.mxu0
    %v320 = vadd.f32 %v56, %v319
    %v321 = vpop.f32.mrf.mxu0
    %322 = vdwg.mxu0
    %v323 = vmax.f32 %v200, 0.0
    %v324 = vmax.f32 %v205, 0.0
    %v325 = vmax.f32 %v210, 0.0
    %v326 = vmax.f32 %v215, 0.0
    %v327 = vmax.f32 %v220, 0.0
    %v328 = vmax.f32 %v225, 0.0
    %v329 = vmax.f32 %v230, 0.0
    %v330 = vmax.f32 %v235, 0.0
    %v331 = vmax.f32 %v240, 0.0
    %v332 = vmax.f32 %v245, 0.0
    %v333 = vmax.f32 %v250, 0.0
    %v334 = vmax.f32 %v255, 0.0
    %v335 = vmax.f32 %v260, 0.0
    %v336 = vmax.f32 %v265, 0.0
    %v337 = vmax.f32 %v270, 0.0
    %v338 = vmax.f32 %v275, 0.0
    %v339 = vmax.f32 %v280, 0.0
    %v340 = vmax.f32 %v285, 0.0
    %v341 = vmax.f32 %v290, 0.0
    %v342 = vmax.f32 %v295, 0.0
    %v343 = vmax.f32 %v300, 0.0
    %v344 = vmax.f32 %v305, 0.0
    %v345 = vmax.f32 %v310, 0.0
    %v346 = vmax.f32 %v315, 0.0
    %v347 = vmax.f32 %v320, 0.0
    %v348 = vld [vmem:[#allocation2 + $0x8] sm:$0xff]
    %v349 = vld [vmem:[#allocation2 + $0x10] sm:$0xff]
    %v350 = vld [vmem:[#allocation2 + $0x18] sm:$0xff]
    %v351 = vld [vmem:[#allocation2 + $0x20] sm:$0xff]
    %v352 = vld [vmem:[#allocation2 + $0x28] sm:$0xff]
    %v353 = vld [vmem:[#allocation2 + $0x30] sm:$0xff]
    %v354 = vld [vmem:[#allocation2 + $0x38] sm:$0xff]
    %v355 = vld [vmem:[#allocation2 + $0x40] sm:$0xff]
    %v356 = vld [vmem:[#allocation2 + $0x48] sm:$0xff]
    %v357 = vld [vmem:[#allocation2 + $0x50] sm:$0xff]
    %v358 = vld [vmem:[#allocation2 + $0x58] sm:$0xff]
    %v359 = vld [vmem:[#allocation2 + $0x60] sm:$0xff]
    %v360 = vld [vmem:[#allocation2 + $0x68] sm:$0xff]
    %v361 = vld [vmem:[#allocation2 + $0x70] sm:$0xff]
    %v362 = vld [vmem:[#allocation2 + $0x78] sm:$0xff]
    %v363 = vld [vmem:[#allocation2 + $0x80] sm:$0xff]
    %v364 = vld [vmem:[#allocation2 + $0x110] sm:$0x1]
    %v365 = vlaneseq
    %v366 = vshrl.u32 %v365, 7
    %v367 = vsub.s32 0, %v366
    %v368 = vrot.slane %v364, %v367
    %369 = vmatprep.subr.mxu0 0.0
    %370 = vmatpush1.msra.mxu0 %v363
    %371 = vmatprep.subr.mxu0 0.0
    %372 = vmatpush1.msra.mxu0 %v362
    %373 = vmatprep.subr.mxu0 0.0
    %374 = vmatpush1.msra.mxu0 %v361
    %375 = vmatprep.subr.mxu0 0.0
    %376 = vmatpush1.msra.mxu0 %v360
    %377 = vmatprep.subr.mxu0 0.0
    %378 = vmatpush1.msra.mxu0 %v359
    %379 = vmatprep.subr.mxu0 0.0
    %380 = vmatpush1.msra.mxu0 %v358
    %381 = vmatprep.subr.mxu0 0.0
    %382 = vmatpush1.msra.mxu0 %v357
    %383 = vmatprep.subr.mxu0 0.0
    %384 = vmatpush1.msra.mxu0 %v356
    %385 = vmatprep.subr.mxu0 0.0
    %386 = vmatpush1.msra.mxu0 %v355
    %387 = vmatprep.subr.mxu0 0.0
    %388 = vmatpush1.msra.mxu0 %v354
    %389 = vmatprep.subr.mxu0 0.0
    %390 = vmatpush1.msra.mxu0 %v353
    %391 = vmatprep.subr.mxu0 0.0
    %392 = vmatpush1.msra.mxu0 %v352
    %393 = vmatprep.subr.mxu0 0.0
    %394 = vmatpush1.msra.mxu0 %v351
    %395 = vmatprep.subr.mxu0 0.0
    %396 = vmatpush1.msra.mxu0 %v350
    %397 = vmatprep.subr.mxu0 0.0
    %398 = vmatpush1.msra.mxu0 %v349
    %399 = vmatprep.subr.mxu0 0.0
    %400 = vmatpush1.msra.mxu0 %v348
    %401 = vmatprep.subr.mxu0 0.0
    %402 = vmatpush2.msra.mxu0 0.0
    %403 = vmatprep.subr.mxu0 0.0
    %404 = vmatpush2.msra.mxu0 0.0
    %405 = vmatprep.subr.mxu0 0.0
    %406 = vmatpush2.msra.mxu0 0.0
    %407 = vmatprep.subr.mxu0 0.0
    %408 = vmatpush2.msra.mxu0 0.0
    %409 = vmatprep.subr.mxu0 0.0
    %410 = vmatpush2.msra.mxu0 0.0
    %411 = vmatprep.subr.mxu0 0.0
    %412 = vmatpush2.msra.mxu0 0.0
    %413 = vmatprep.subr.mxu0 0.0
    %414 = vmatpush2.msra.mxu0 0.0
    %415 = vmatprep.subr.mxu0 0.0
    %416 = vmatpush2.msra.mxu0 0.0
    %417 = vmatprep.subr.mxu0 0.0
    %418 = vmatpush2.msra.mxu0 0.0
    %419 = vmatprep.subr.mxu0 0.0
    %420 = vmatpush2.msra.mxu0 0.0
    %421 = vmatprep.subr.mxu0 0.0
    %422 = vmatpush2.msra.mxu0 0.0
    %423 = vmatprep.subr.mxu0 0.0
    %424 = vmatpush2.msra.mxu0 0.0
    %425 = vmatprep.subr.mxu0 0.0
    %426 = vmatpush2.msra.mxu0 0.0
    %427 = vmatprep.subr.mxu0 0.0
    %428 = vmatpush2.msra.mxu0 0.0
    %429 = vmatprep.subr.mxu0 0.0
    %430 = vmatpush2.msra.mxu0 0.0
    %431 = vmatprep.subr.mxu0 0.0
    %432 = vmatpush2.msra.mxu0 0.0
    %433 = vmatprep.mubr.f32.mxu0 0.0
    %434 = vmatmul.mubr.f32.gmra.mxu0 %v323
    %v435 = vpop.f32.mrf.mxu0
    %v436 = vadd.f32 %v368, %v435
    %v437 = vpop.f32.mrf.mxu0
    %438 = vmatprep.mubr.f32.mxu0 0.0
    %439 = vmatmul.mubr.f32.gmra.mxu0 %v324
    %v440 = vpop.f32.mrf.mxu0
    %v441 = vadd.f32 %v368, %v440
    %v442 = vpop.f32.mrf.mxu0
    %443 = vmatprep.mubr.f32.mxu0 0.0
    %444 = vmatmul.mubr.f32.gmra.mxu0 %v325
    %v445 = vpop.f32.mrf.mxu0
    %v446 = vadd.f32 %v368, %v445
    %v447 = vpop.f32.mrf.mxu0
    %448 = vmatprep.mubr.f32.mxu0 0.0
    %449 = vmatmul.mubr.f32.gmra.mxu0 %v326
    %v450 = vpop.f32.mrf.mxu0
    %v451 = vadd.f32 %v368, %v450
    %v452 = vpop.f32.mrf.mxu0
    %453 = vmatprep.mubr.f32.mxu0 0.0
    %454 = vmatmul.mubr.f32.gmra.mxu0 %v327
    %v455 = vpop.f32.mrf.mxu0
    %v456 = vadd.f32 %v368, %v455
    %v457 = vpop.f32.mrf.mxu0
    %458 = vmatprep.mubr.f32.mxu0 0.0
    %459 = vmatmul.mubr.f32.gmra.mxu0 %v328
    %v460 = vpop.f32.mrf.mxu0
    %v461 = vadd.f32 %v368, %v460
    %v462 = vpop.f32.mrf.mxu0
    %463 = vmatprep.mubr.f32.mxu0 0.0
    %464 = vmatmul.mubr.f32.gmra.mxu0 %v329
    %v465 = vpop.f32.mrf.mxu0
    %v466 = vadd.f32 %v368, %v465
    %v467 = vpop.f32.mrf.mxu0
    %468 = vmatprep.mubr.f32.mxu0 0.0
    %469 = vmatmul.mubr.f32.gmra.mxu0 %v330
    %v470 = vpop.f32.mrf.mxu0
    %v471 = vadd.f32 %v368, %v470
    %v472 = vpop.f32.mrf.mxu0
    %473 = vmatprep.mubr.f32.mxu0 0.0
    %474 = vmatmul.mubr.f32.gmra.mxu0 %v331
    %v475 = vpop.f32.mrf.mxu0
    %v476 = vadd.f32 %v368, %v475
    %v477 = vpop.f32.mrf.mxu0
    %478 = vmatprep.mubr.f32.mxu0 0.0
    %479 = vmatmul.mubr.f32.gmra.mxu0 %v332
    %v480 = vpop.f32.mrf.mxu0
    %v481 = vadd.f32 %v368, %v480
    %v482 = vpop.f32.mrf.mxu0
    %483 = vmatprep.mubr.f32.mxu0 0.0
    %484 = vmatmul.mubr.f32.gmra.mxu0 %v333
    %v485 = vpop.f32.mrf.mxu0
    %v486 = vadd.f32 %v368, %v485
    %v487 = vpop.f32.mrf.mxu0
    %488 = vmatprep.mubr.f32.mxu0 0.0
    %489 = vmatmul.mubr.f32.gmra.mxu0 %v334
    %v490 = vpop.f32.mrf.mxu0
    %v491 = vadd.f32 %v368, %v490
    %v492 = vpop.f32.mrf.mxu0
    %493 = vmatprep.mubr.f32.mxu0 0.0
    %494 = vmatmul.mubr.f32.gmra.mxu0 %v335
    %v495 = vpop.f32.mrf.mxu0
    %v496 = vadd.f32 %v368, %v495
    %v497 = vpop.f32.mrf.mxu0
    %498 = vmatprep.mubr.f32.mxu0 0.0
    %499 = vmatmul.mubr.f32.gmra.mxu0 %v336
    %v500 = vpop.f32.mrf.mxu0
    %v501 = vadd.f32 %v368, %v500
    %v502 = vpop.f32.mrf.mxu0
    %503 = vmatprep.mubr.f32.mxu0 0.0
    %504 = vmatmul.mubr.f32.gmra.mxu0 %v337
    %v505 = vpop.f32.mrf.mxu0
    %v506 = vadd.f32 %v368, %v505
    %v507 = vpop.f32.mrf.mxu0
    %508 = vmatprep.mubr.f32.mxu0 0.0
    %509 = vmatmul.mubr.f32.gmra.mxu0 %v338
    %v510 = vpop.f32.mrf.mxu0
    %v511 = vadd.f32 %v368, %v510
    %v512 = vpop.f32.mrf.mxu0
    %513 = vmatprep.mubr.f32.mxu0 0.0
    %514 = vmatmul.mubr.f32.gmra.mxu0 %v339
    %v515 = vpop.f32.mrf.mxu0
    %v516 = vadd.f32 %v368, %v515
    %v517 = vpop.f32.mrf.mxu0
    %518 = vmatprep.mubr.f32.mxu0 0.0
    %519 = vmatmul.mubr.f32.gmra.mxu0 %v340
    %v520 = vpop.f32.mrf.mxu0
    %v521 = vadd.f32 %v368, %v520
    %v522 = vpop.f32.mrf.mxu0
    %523 = vmatprep.mubr.f32.mxu0 0.0
    %524 = vmatmul.mubr.f32.gmra.mxu0 %v341
    %v525 = vpop.f32.mrf.mxu0
    %v526 = vadd.f32 %v368, %v525
    %v527 = vpop.f32.mrf.mxu0
    %528 = vmatprep.mubr.f32.mxu0 0.0
    %529 = vmatmul.mubr.f32.gmra.mxu0 %v342
    %v530 = vpop.f32.mrf.mxu0
    %v531 = vadd.f32 %v368, %v530
    %v532 = vpop.f32.mrf.mxu0
    %533 = vmatprep.mubr.f32.mxu0 0.0
    %534 = vmatmul.mubr.f32.gmra.mxu0 %v343
    %v535 = vpop.f32.mrf.mxu0
    %v536 = vadd.f32 %v368, %v535
    %v537 = vpop.f32.mrf.mxu0
    %538 = vmatprep.mubr.f32.mxu0 0.0
    %539 = vmatmul.mubr.f32.gmra.mxu0 %v344
    %v540 = vpop.f32.mrf.mxu0
    %v541 = vadd.f32 %v368, %v540
    %v542 = vpop.f32.mrf.mxu0
    %543 = vmatprep.mubr.f32.mxu0 0.0
    %544 = vmatmul.mubr.f32.gmra.mxu0 %v345
    %v545 = vpop.f32.mrf.mxu0
    %v546 = vadd.f32 %v368, %v545
    %v547 = vpop.f32.mrf.mxu0
    %548 = vmatprep.mubr.f32.mxu0 0.0
    %549 = vmatmul.mubr.f32.gmra.mxu0 %v346
    %v550 = vpop.f32.mrf.mxu0
    %v551 = vadd.f32 %v368, %v550
    %v552 = vpop.f32.mrf.mxu0
    %553 = vmatprep.mubr.f32.mxu0 0.0
    %554 = vmatmul.mubr.f32.gmra.mxu0 %v347
    %v555 = vpop.f32.mrf.mxu0
    %v556 = vadd.f32 %v368, %v555
    %v557 = vpop.f32.mrf.mxu0
    %558 = vdwg.mxu0
    %v559 = vmax.f32 %v436, 0.0
    %v560 = vmax.f32 %v441, 0.0
    %v561 = vmax.f32 %v446, 0.0
    %v562 = vmax.f32 %v451, 0.0
    %v563 = vmax.f32 %v456, 0.0
    %v564 = vmax.f32 %v461, 0.0
    %v565 = vmax.f32 %v466, 0.0
    %v566 = vmax.f32 %v471, 0.0
    %v567 = vmax.f32 %v476, 0.0
    %v568 = vmax.f32 %v481, 0.0
    %v569 = vmax.f32 %v486, 0.0
    %v570 = vmax.f32 %v491, 0.0
    %v571 = vmax.f32 %v496, 0.0
    %v572 = vmax.f32 %v501, 0.0
    %v573 = vmax.f32 %v506, 0.0
    %v574 = vmax.f32 %v511, 0.0
    %v575 = vmax.f32 %v516, 0.0
    %v576 = vmax.f32 %v521, 0.0
    %v577 = vmax.f32 %v526, 0.0
    %v578 = vmax.f32 %v531, 0.0
    %v579 = vmax.f32 %v536, 0.0
    %v580 = vmax.f32 %v541, 0.0
    %v581 = vmax.f32 %v546, 0.0
    %v582 = vmax.f32 %v551, 0.0
    %v583 = vmax.f32 %v556, 0.0
    %v584 = vld [vmem:[#allocation2 + $0x88] sm:$0xff]
    %v585 = vld [vmem:[#allocation2 + $0x90] sm:$0xff]
    %v586 = vld [vmem:[#allocation2 + $0x98] sm:$0xff]
    %v587 = vld [vmem:[#allocation2 + $0xa0] sm:$0xff]
    %v588 = vld [vmem:[#allocation2 + $0xa8] sm:$0xff]
    %v589 = vld [vmem:[#allocation2 + $0xb0] sm:$0xff]
    %v590 = vld [vmem:[#allocation2 + $0xb8] sm:$0xff]
    %v591 = vld [vmem:[#allocation2 + $0xc0] sm:$0xff]
    %v592 = vld [vmem:[#allocation2 + $0xc8] sm:$0xff]
    %v593 = vld [vmem:[#allocation2 + $0xd0] sm:$0xff]
    %v594 = vld [vmem:[#allocation2 + $0xd8] sm:$0xff]
    %v595 = vld [vmem:[#allocation2 + $0xe0] sm:$0xff]
    %v596 = vld [vmem:[#allocation2 + $0xe8] sm:$0xff]
    %v597 = vld [vmem:[#allocation2 + $0xf0] sm:$0xff]
    %v598 = vld [vmem:[#allocation2 + $0xf8] sm:$0xff]
    %v599 = vld [vmem:[#allocation2 + $0x100] sm:$0xff]
    %v600 = vld [vmem:[#allocation2 + $0x118] sm:$0x1]
    %v601 = vlaneseq
    %v602 = vshrl.u32 %v601, 7
    %v603 = vsub.s32 0, %v602
    %v604 = vrot.slane %v600, %v603
    %605 = vmatprep.subr.mxu0 0.0
    %606 = vmatpush1.msra.mxu0 %v599
    %607 = vmatprep.subr.mxu0 0.0
    %608 = vmatpush1.msra.mxu0 %v598
    %609 = vmatprep.subr.mxu0 0.0
    %610 = vmatpush1.msra.mxu0 %v597
    %611 = vmatprep.subr.mxu0 0.0
    %612 = vmatpush1.msra.mxu0 %v596
    %613 = vmatprep.subr.mxu0 0.0
    %614 = vmatpush1.msra.mxu0 %v595
    %615 = vmatprep.subr.mxu0 0.0
    %616 = vmatpush1.msra.mxu0 %v594
    %617 = vmatprep.subr.mxu0 0.0
    %618 = vmatpush1.msra.mxu0 %v593
    %619 = vmatprep.subr.mxu0 0.0
    %620 = vmatpush1.msra.mxu0 %v592
    %621 = vmatprep.subr.mxu0 0.0
    %622 = vmatpush1.msra.mxu0 %v591
    %623 = vmatprep.subr.mxu0 0.0
    %624 = vmatpush1.msra.mxu0 %v590
    %625 = vmatprep.subr.mxu0 0.0
    %626 = vmatpush1.msra.mxu0 %v589
    %627 = vmatprep.subr.mxu0 0.0
    %628 = vmatpush1.msra.mxu0 %v588
    %629 = vmatprep.subr.mxu0 0.0
    %630 = vmatpush1.msra.mxu0 %v587
    %631 = vmatprep.subr.mxu0 0.0
    %632 = vmatpush1.msra.mxu0 %v586
    %633 = vmatprep.subr.mxu0 0.0
    %634 = vmatpush1.msra.mxu0 %v585
    %635 = vmatprep.subr.mxu0 0.0
    %636 = vmatpush1.msra.mxu0 %v584
    %637 = vmatprep.subr.mxu0 0.0
    %638 = vmatpush2.msra.mxu0 0.0
    %639 = vmatprep.subr.mxu0 0.0
    %640 = vmatpush2.msra.mxu0 0.0
    %641 = vmatprep.subr.mxu0 0.0
    %642 = vmatpush2.msra.mxu0 0.0
    %643 = vmatprep.subr.mxu0 0.0
    %644 = vmatpush2.msra.mxu0 0.0
    %645 = vmatprep.subr.mxu0 0.0
    %646 = vmatpush2.msra.mxu0 0.0
    %647 = vmatprep.subr.mxu0 0.0
    %648 = vmatpush2.msra.mxu0 0.0
    %649 = vmatprep.subr.mxu0 0.0
    %650 = vmatpush2.msra.mxu0 0.0
    %651 = vmatprep.subr.mxu0 0.0
    %652 = vmatpush2.msra.mxu0 0.0
    %653 = vmatprep.subr.mxu0 0.0
    %654 = vmatpush2.msra.mxu0 0.0
    %655 = vmatprep.subr.mxu0 0.0
    %656 = vmatpush2.msra.mxu0 0.0
    %657 = vmatprep.subr.mxu0 0.0
    %658 = vmatpush2.msra.mxu0 0.0
    %659 = vmatprep.subr.mxu0 0.0
    %660 = vmatpush2.msra.mxu0 0.0
    %661 = vmatprep.subr.mxu0 0.0
    %662 = vmatpush2.msra.mxu0 0.0
    %663 = vmatprep.subr.mxu0 0.0
    %664 = vmatpush2.msra.mxu0 0.0
    %665 = vmatprep.subr.mxu0 0.0
    %666 = vmatpush2.msra.mxu0 0.0
    %667 = vmatprep.subr.mxu0 0.0
    %668 = vmatpush2.msra.mxu0 0.0
    %669 = vmatprep.mubr.f32.mxu0 0.0
    %670 = vmatmul.mubr.f32.gmra.mxu0 %v559
    %v671 = vpop.f32.mrf.mxu0
    %v672 = vadd.f32 %v604, %v671
    %v673 = vpop.f32.mrf.mxu0
    %674 = vmatprep.mubr.f32.mxu0 0.0
    %675 = vmatmul.mubr.f32.gmra.mxu0 %v560
    %v676 = vpop.f32.mrf.mxu0
    %v677 = vadd.f32 %v604, %v676
    %v678 = vpop.f32.mrf.mxu0
    %679 = vmatprep.mubr.f32.mxu0 0.0
    %680 = vmatmul.mubr.f32.gmra.mxu0 %v561
    %v681 = vpop.f32.mrf.mxu0
    %v682 = vadd.f32 %v604, %v681
    %v683 = vpop.f32.mrf.mxu0
    %684 = vmatprep.mubr.f32.mxu0 0.0
    %685 = vmatmul.mubr.f32.gmra.mxu0 %v562
    %v686 = vpop.f32.mrf.mxu0
    %v687 = vadd.f32 %v604, %v686
    %v688 = vpop.f32.mrf.mxu0
    %689 = vmatprep.mubr.f32.mxu0 0.0
    %690 = vmatmul.mubr.f32.gmra.mxu0 %v563
    %v691 = vpop.f32.mrf.mxu0
    %v692 = vadd.f32 %v604, %v691
    %v693 = vpop.f32.mrf.mxu0
    %694 = vmatprep.mubr.f32.mxu0 0.0
    %695 = vmatmul.mubr.f32.gmra.mxu0 %v564
    %v696 = vpop.f32.mrf.mxu0
    %v697 = vadd.f32 %v604, %v696
    %v698 = vpop.f32.mrf.mxu0
    %699 = vmatprep.mubr.f32.mxu0 0.0
    %700 = vmatmul.mubr.f32.gmra.mxu0 %v565
    %v701 = vpop.f32.mrf.mxu0
    %v702 = vadd.f32 %v604, %v701
    %v703 = vpop.f32.mrf.mxu0
    %704 = vmatprep.mubr.f32.mxu0 0.0
    %705 = vmatmul.mubr.f32.gmra.mxu0 %v566
    %v706 = vpop.f32.mrf.mxu0
    %v707 = vadd.f32 %v604, %v706
    %v708 = vpop.f32.mrf.mxu0
    %709 = vmatprep.mubr.f32.mxu0 0.0
    %710 = vmatmul.mubr.f32.gmra.mxu0 %v567
    %v711 = vpop.f32.mrf.mxu0
    %v712 = vadd.f32 %v604, %v711
    %v713 = vpop.f32.mrf.mxu0
    %714 = vmatprep.mubr.f32.mxu0 0.0
    %715 = vmatmul.mubr.f32.gmra.mxu0 %v568
    %v716 = vpop.f32.mrf.mxu0
    %v717 = vadd.f32 %v604, %v716
    %v718 = vpop.f32.mrf.mxu0
    %719 = vmatprep.mubr.f32.mxu0 0.0
    %720 = vmatmul.mubr.f32.gmra.mxu0 %v569
    %v721 = vpop.f32.mrf.mxu0
    %v722 = vadd.f32 %v604, %v721
    %v723 = vpop.f32.mrf.mxu0
    %724 = vmatprep.mubr.f32.mxu0 0.0
    %725 = vmatmul.mubr.f32.gmra.mxu0 %v570
    %v726 = vpop.f32.mrf.mxu0
    %v727 = vadd.f32 %v604, %v726
    %v728 = vpop.f32.mrf.mxu0
    %729 = vmatprep.mubr.f32.mxu0 0.0
    %730 = vmatmul.mubr.f32.gmra.mxu0 %v571
    %v731 = vpop.f32.mrf.mxu0
    %v732 = vadd.f32 %v604, %v731
    %v733 = vpop.f32.mrf.mxu0
    %734 = vmatprep.mubr.f32.mxu0 0.0
    %735 = vmatmul.mubr.f32.gmra.mxu0 %v572
    %v736 = vpop.f32.mrf.mxu0
    %v737 = vadd.f32 %v604, %v736
    %v738 = vpop.f32.mrf.mxu0
    %739 = vmatprep.mubr.f32.mxu0 0.0
    %740 = vmatmul.mubr.f32.gmra.mxu0 %v573
    %v741 = vpop.f32.mrf.mxu0
    %v742 = vadd.f32 %v604, %v741
    %v743 = vpop.f32.mrf.mxu0
    %744 = vmatprep.mubr.f32.mxu0 0.0
    %745 = vmatmul.mubr.f32.gmra.mxu0 %v574
    %v746 = vpop.f32.mrf.mxu0
    %v747 = vadd.f32 %v604, %v746
    %v748 = vpop.f32.mrf.mxu0
    %749 = vmatprep.mubr.f32.mxu0 0.0
    %750 = vmatmul.mubr.f32.gmra.mxu0 %v575
    %v751 = vpop.f32.mrf.mxu0
    %v752 = vadd.f32 %v604, %v751
    %v753 = vpop.f32.mrf.mxu0
    %754 = vmatprep.mubr.f32.mxu0 0.0
    %755 = vmatmul.mubr.f32.gmra.mxu0 %v576
    %v756 = vpop.f32.mrf.mxu0
    %v757 = vadd.f32 %v604, %v756
    %v758 = vpop.f32.mrf.mxu0
    %759 = vmatprep.mubr.f32.mxu0 0.0
    %760 = vmatmul.mubr.f32.gmra.mxu0 %v577
    %v761 = vpop.f32.mrf.mxu0
    %v762 = vadd.f32 %v604, %v761
    %v763 = vpop.f32.mrf.mxu0
    %764 = vmatprep.mubr.f32.mxu0 0.0
    %765 = vmatmul.mubr.f32.gmra.mxu0 %v578
    %v766 = vpop.f32.mrf.mxu0
    %v767 = vadd.f32 %v604, %v766
    %v768 = vpop.f32.mrf.mxu0
    %769 = vmatprep.mubr.f32.mxu0 0.0
    %770 = vmatmul.mubr.f32.gmra.mxu0 %v579
    %v771 = vpop.f32.mrf.mxu0
    %v772 = vadd.f32 %v604, %v771
    %v773 = vpop.f32.mrf.mxu0
    %774 = vmatprep.mubr.f32.mxu0 0.0
    %775 = vmatmul.mubr.f32.gmra.mxu0 %v580
    %v776 = vpop.f32.mrf.mxu0
    %v777 = vadd.f32 %v604, %v776
    %v778 = vpop.f32.mrf.mxu0
    %779 = vmatprep.mubr.f32.mxu0 0.0
    %780 = vmatmul.mubr.f32.gmra.mxu0 %v581
    %v781 = vpop.f32.mrf.mxu0
    %v782 = vadd.f32 %v604, %v781
    %v783 = vpop.f32.mrf.mxu0
    %784 = vmatprep.mubr.f32.mxu0 0.0
    %785 = vmatmul.mubr.f32.gmra.mxu0 %v582
    %v786 = vpop.f32.mrf.mxu0
    %v787 = vadd.f32 %v604, %v786
    %v788 = vpop.f32.mrf.mxu0
    %789 = vmatprep.mubr.f32.mxu0 0.0
    %790 = vmatmul.mubr.f32.gmra.mxu0 %v583
    %v791 = vpop.f32.mrf.mxu0
    %v792 = vadd.f32 %v604, %v791
    %v793 = vpop.f32.mrf.mxu0
    %794 = vdwg.mxu0
    %795 = vmax.xlane.f32.xlu0 %v672
    %v796 = vpop.xlane.xlu0 %795
    %797 = vmax.xlane.f32.xlu0 %v677
    %v798 = vpop.xlane.xlu0 %797
    %799 = vmax.xlane.f32.xlu0 %v682
    %v800 = vpop.xlane.xlu0 %799
    %801 = vmax.xlane.f32.xlu0 %v687
    %v802 = vpop.xlane.xlu0 %801
    %803 = vmax.xlane.f32.xlu0 %v692
    %v804 = vpop.xlane.xlu0 %803
    %805 = vmax.xlane.f32.xlu0 %v697
    %v806 = vpop.xlane.xlu0 %805
    %807 = vmax.xlane.f32.xlu0 %v702
    %v808 = vpop.xlane.xlu0 %807
    %809 = vmax.xlane.f32.xlu0 %v707
    %v810 = vpop.xlane.xlu0 %809
    %811 = vmax.xlane.f32.xlu0 %v712
    %v812 = vpop.xlane.xlu0 %811
    %813 = vmax.xlane.f32.xlu0 %v717
    %v814 = vpop.xlane.xlu0 %813
    %815 = vmax.xlane.f32.xlu0 %v722
    %v816 = vpop.xlane.xlu0 %815
    %817 = vmax.xlane.f32.xlu0 %v727
    %v818 = vpop.xlane.xlu0 %817
    %819 = vmax.xlane.f32.xlu0 %v732
    %v820 = vpop.xlane.xlu0 %819
    %821 = vmax.xlane.f32.xlu0 %v737
    %v822 = vpop.xlane.xlu0 %821
    %823 = vmax.xlane.f32.xlu0 %v742
    %v824 = vpop.xlane.xlu0 %823
    %825 = vmax.xlane.f32.xlu0 %v747
    %v826 = vpop.xlane.xlu0 %825
    %827 = vmax.xlane.f32.xlu0 %v752
    %v828 = vpop.xlane.xlu0 %827
    %829 = vmax.xlane.f32.xlu0 %v757
    %v830 = vpop.xlane.xlu0 %829
    %831 = vmax.xlane.f32.xlu0 %v762
    %v832 = vpop.xlane.xlu0 %831
    %833 = vmax.xlane.f32.xlu0 %v767
    %v834 = vpop.xlane.xlu0 %833
    %835 = vmax.xlane.f32.xlu0 %v772
    %v836 = vpop.xlane.xlu0 %835
    %837 = vmax.xlane.f32.xlu0 %v777
    %v838 = vpop.xlane.xlu0 %837
    %839 = vmax.xlane.f32.xlu0 %v782
    %v840 = vpop.xlane.xlu0 %839
    %841 = vmax.xlane.f32.xlu0 %v787
    %v842 = vpop.xlane.xlu0 %841
    %843 = vmax.xlane.f32.xlu0 %v792
    %v844 = vpop.xlane.xlu0 %843
    %v845 = vsub.f32 %v672, %v796
    %v846 = vsub.f32 %v677, %v798
    %v847 = vsub.f32 %v682, %v800
    %v848 = vsub.f32 %v687, %v802
    %v849 = vsub.f32 %v692, %v804
    %v850 = vsub.f32 %v697, %v806
    %v851 = vsub.f32 %v702, %v808
    %v852 = vsub.f32 %v707, %v810
    %v853 = vsub.f32 %v712, %v812
    %v854 = vsub.f32 %v717, %v814
    %v855 = vsub.f32 %v722, %v816
    %v856 = vsub.f32 %v727, %v818
    %v857 = vsub.f32 %v732, %v820
    %v858 = vsub.f32 %v737, %v822
    %v859 = vsub.f32 %v742, %v824
    %v860 = vsub.f32 %v747, %v826
    %v861 = vsub.f32 %v752, %v828
    %v862 = vsub.f32 %v757, %v830
    %v863 = vsub.f32 %v762, %v832
    %v864 = vsub.f32 %v767, %v834
    %v865 = vsub.f32 %v772, %v836
    %v866 = vsub.f32 %v777, %v838
    %v867 = vsub.f32 %v782, %v840
    %v868 = vsub.f32 %v787, %v842
    %v869 = vsub.f32 %v792, %v844
    %v870 = vmul.f32 %v845, 1.442695
    %v871 = vpow.pop %v870
    %v872 = vmul.f32 %v846, 1.442695
    %v873 = vpow.pop %v872
    %v874 = vmul.f32 %v847, 1.442695
    %v875 = vpow.pop %v874
    %v876 = vmul.f32 %v848, 1.442695
    %v877 = vpow.pop %v876
    %v878 = vmul.f32 %v849, 1.442695
    %v879 = vpow.pop %v878
    %v880 = vmul.f32 %v850, 1.442695
    %v881 = vpow.pop %v880
    %v882 = vmul.f32 %v851, 1.442695
    %v883 = vpow.pop %v882
    %v884 = vmul.f32 %v852, 1.442695
    %v885 = vpow.pop %v884
    %v886 = vmul.f32 %v853, 1.442695
    %v887 = vpow.pop %v886
    %v888 = vmul.f32 %v854, 1.442695
    %v889 = vpow.pop %v888
    %v890 = vmul.f32 %v855, 1.442695
    %v891 = vpow.pop %v890
    %v892 = vmul.f32 %v856, 1.442695
    %v893 = vpow.pop %v892
    %v894 = vmul.f32 %v857, 1.442695
    %v895 = vpow.pop %v894
    %v896 = vmul.f32 %v858, 1.442695
    %v897 = vpow.pop %v896
    %v898 = vmul.f32 %v859, 1.442695
    %v899 = vpow.pop %v898
    %v900 = vmul.f32 %v860, 1.442695
    %v901 = vpow.pop %v900
    %v902 = vmul.f32 %v861, 1.442695
    %v903 = vpow.pop %v902
    %v904 = vmul.f32 %v862, 1.442695
    %v905 = vpow.pop %v904
    %v906 = vmul.f32 %v863, 1.442695
    %v907 = vpow.pop %v906
    %v908 = vmul.f32 %v864, 1.442695
    %v909 = vpow.pop %v908
    %v910 = vmul.f32 %v865, 1.442695
    %v911 = vpow.pop %v910
    %v912 = vmul.f32 %v866, 1.442695
    %v913 = vpow.pop %v912
    %v914 = vmul.f32 %v867, 1.442695
    %v915 = vpow.pop %v914
    %v916 = vmul.f32 %v868, 1.442695
    %v917 = vpow.pop %v916
    %v918 = vmul.f32 %v869, 1.442695
    %v919 = vpow.pop %v918
    %920 = vadd.xlane.f32.xlu0 %v871
    %v921 = vpop.xlane.xlu0 %920
    %922 = vadd.xlane.f32.xlu0 %v873
    %v923 = vpop.xlane.xlu0 %922
    %924 = vadd.xlane.f32.xlu0 %v875
    %v925 = vpop.xlane.xlu0 %924
    %926 = vadd.xlane.f32.xlu0 %v877
    %v927 = vpop.xlane.xlu0 %926
    %928 = vadd.xlane.f32.xlu0 %v879
    %v929 = vpop.xlane.xlu0 %928
    %930 = vadd.xlane.f32.xlu0 %v881
    %v931 = vpop.xlane.xlu0 %930
    %932 = vadd.xlane.f32.xlu0 %v883
    %v933 = vpop.xlane.xlu0 %932
    %934 = vadd.xlane.f32.xlu0 %v885
    %v935 = vpop.xlane.xlu0 %934
    %936 = vadd.xlane.f32.xlu0 %v887
    %v937 = vpop.xlane.xlu0 %936
    %938 = vadd.xlane.f32.xlu0 %v889
    %v939 = vpop.xlane.xlu0 %938
    %940 = vadd.xlane.f32.xlu0 %v891
    %v941 = vpop.xlane.xlu0 %940
    %942 = vadd.xlane.f32.xlu0 %v893
    %v943 = vpop.xlane.xlu0 %942
    %944 = vadd.xlane.f32.xlu0 %v895
    %v945 = vpop.xlane.xlu0 %944
    %946 = vadd.xlane.f32.xlu0 %v897
    %v947 = vpop.xlane.xlu0 %946
    %948 = vadd.xlane.f32.xlu0 %v899
    %v949 = vpop.xlane.xlu0 %948
    %950 = vadd.xlane.f32.xlu0 %v901
    %v951 = vpop.xlane.xlu0 %950
    %952 = vadd.xlane.f32.xlu0 %v903
    %v953 = vpop.xlane.xlu0 %952
    %954 = vadd.xlane.f32.xlu0 %v905
    %v955 = vpop.xlane.xlu0 %954
    %956 = vadd.xlane.f32.xlu0 %v907
    %v957 = vpop.xlane.xlu0 %956
    %958 = vadd.xlane.f32.xlu0 %v909
    %v959 = vpop.xlane.xlu0 %958
    %960 = vadd.xlane.f32.xlu0 %v911
    %v961 = vpop.xlane.xlu0 %960
    %962 = vadd.xlane.f32.xlu0 %v913
    %v963 = vpop.xlane.xlu0 %962
    %964 = vadd.xlane.f32.xlu0 %v915
    %v965 = vpop.xlane.xlu0 %964
    %966 = vadd.xlane.f32.xlu0 %v917
    %v967 = vpop.xlane.xlu0 %966
    %968 = vadd.xlane.f32.xlu0 %v919
    %v969 = vpop.xlane.xlu0 %968
    %v970 = vrcp.pop %v921
    %v971 = vmul.f32 %v871, %v970
    %v972 = vrcp.pop %v923
    %v973 = vmul.f32 %v873, %v972
    %v974 = vrcp.pop %v925
    %v975 = vmul.f32 %v875, %v974
    %v976 = vrcp.pop %v927
    %v977 = vmul.f32 %v877, %v976
    %v978 = vrcp.pop %v929
    %v979 = vmul.f32 %v879, %v978
    %v980 = vrcp.pop %v931
    %v981 = vmul.f32 %v881, %v980
    %v982 = vrcp.pop %v933
    %v983 = vmul.f32 %v883, %v982
    %v984 = vrcp.pop %v935
    %v985 = vmul.f32 %v885, %v984
    %v986 = vrcp.pop %v937
    %v987 = vmul.f32 %v887, %v986
    %v988 = vrcp.pop %v939
    %v989 = vmul.f32 %v889, %v988
    %v990 = vrcp.pop %v941
    %v991 = vmul.f32 %v891, %v990
    %v992 = vrcp.pop %v943
    %v993 = vmul.f32 %v893, %v992
    %v994 = vrcp.pop %v945
    %v995 = vmul.f32 %v895, %v994
    %v996 = vrcp.pop %v947
    %v997 = vmul.f32 %v897, %v996
    %v998 = vrcp.pop %v949
    %v999 = vmul.f32 %v899, %v998
    %v1000 = vrcp.pop %v951
    %v1001 = vmul.f32 %v901, %v1000
    %v1002 = vrcp.pop %v953
    %v1003 = vmul.f32 %v903, %v1002
    %v1004 = vrcp.pop %v955
    %v1005 = vmul.f32 %v905, %v1004
    %v1006 = vrcp.pop %v957
    %v1007 = vmul.f32 %v907, %v1006
    %v1008 = vrcp.pop %v959
    %v1009 = vmul.f32 %v909, %v1008
    %v1010 = vrcp.pop %v961
    %v1011 = vmul.f32 %v911, %v1010
    %v1012 = vrcp.pop %v963
    %v1013 = vmul.f32 %v913, %v1012
    %v1014 = vrcp.pop %v965
    %v1015 = vmul.f32 %v915, %v1014
    %v1016 = vrcp.pop %v967
    %v1017 = vmul.f32 %v917, %v1016
    %v1018 = vrcp.pop %v969
    %v1019 = vmul.f32 %v919, %v1018
    %1020 = vst [vmem:[#allocation5] sm:$0xff] %v971
    %1021 = vst [vmem:[#allocation5 + $0x8] sm:$0xff] %v973
    %1022 = vst [vmem:[#allocation5 + $0x10] sm:$0xff] %v975
    %1023 = vst [vmem:[#allocation5 + $0x18] sm:$0xff] %v977
    %1024 = vst [vmem:[#allocation5 + $0x20] sm:$0xff] %v979
    %1025 = vst [vmem:[#allocation5 + $0x28] sm:$0xff] %v981
    %1026 = vst [vmem:[#allocation5 + $0x30] sm:$0xff] %v983
    %1027 = vst [vmem:[#allocation5 + $0x38] sm:$0xff] %v985
    %1028 = vst [vmem:[#allocation5 + $0x40] sm:$0xff] %v987
    %1029 = vst [vmem:[#allocation5 + $0x48] sm:$0xff] %v989
    %1030 = vst [vmem:[#allocation5 + $0x50] sm:$0xff] %v991
    %1031 = vst [vmem:[#allocation5 + $0x58] sm:$0xff] %v993
    %1032 = vst [vmem:[#allocation5 + $0x60] sm:$0xff] %v995
    %1033 = vst [vmem:[#allocation5 + $0x68] sm:$0xff] %v997
    %1034 = vst [vmem:[#allocation5 + $0x70] sm:$0xff] %v999
    %1035 = vst [vmem:[#allocation5 + $0x78] sm:$0xff] %v1001
    %1036 = vst [vmem:[#allocation5 + $0x80] sm:$0xff] %v1003
    %1037 = vst [vmem:[#allocation5 + $0x88] sm:$0xff] %v1005
    %1038 = vst [vmem:[#allocation5 + $0x90] sm:$0xff] %v1007
    %1039 = vst [vmem:[#allocation5 + $0x98] sm:$0xff] %v1009
    %1040 = vst [vmem:[#allocation5 + $0xa0] sm:$0xff] %v1011
    %1041 = vst [vmem:[#allocation5 + $0xa8] sm:$0xff] %v1013
    %1042 = vst [vmem:[#allocation5 + $0xb0] sm:$0xff] %v1015
    %1043 = vst [vmem:[#allocation5 + $0xb8] sm:$0xff] %v1017
    %1044 = vst [vmem:[#allocation5 + $0xc0] sm:$0xff] %v1019
    // Predicated region
    $region14: #{tpu_custom_call.1} parent=1 // pred_check
      _
    $region15: #{tpu_custom_call.1} parent=1 // pred_check_branch
      %1046 = sbr.rel (0) target = $region17
    $region16: #{tpu_custom_call.1} parent=1 // pred_region
      %s1048 = ssub.s32 3200, 3200
      %1049 = vsyncadd [#allocation4], %s1048
      %s1050 = sshll.u32 [#allocation5], 4
      %s1051 = int_to_ptr.vmem [resolvable:$true] %s1050
      %1056 = dma.vmem_to_hbm [thread:$0]  %s1051, 3200, %s2, [#allocation4], 128, 128, 8
    $region17: #{tpu_custom_call.1} parent=1 // pred_fallthru
      _
    // Predicated region
    $region18: #{tpu_custom_call.1} parent=1 // pred_check
      _
    $region19: #{tpu_custom_call.1} parent=1 // pred_check_branch
      %1058 = sbr.rel (0) target = $region21
    $region20: #{tpu_custom_call.1} parent=1 // pred_region
      %1059 = dma.done [#allocation4], 3200
    $region21: #{tpu_custom_call.1} parent=1 // pred_fallthru
      _
    %1060 = vsyncpa [#allocation3], 1
    %1061 = vsyncpa [#allocation4], 1

</llo_original>
